<compile_context>
chip_gen: v7x
topology: tpu7x:2x2x1
jax: 0.10.0
libtpu: 0.0.40
codegen_flags: <defaults>
</compile_context>

<pallas_src>
import functools
import math

import numpy as np
import jax
import jax.numpy as jnp
from jax.experimental import pallas as pl
from jax.experimental.pallas import tpu as pltpu


def _round_up(x: int, m: int) -> int:
    return (x + m - 1) // m * m


@functools.lru_cache(maxsize=None)
def _interp_matrix_1d(in_size: int, scale: float) -> np.ndarray:
    """1-D linear-interp matrix matching nn.Upsample(mode='trilinear',
    align_corners=False) along one axis (PyTorch uses 1/scale_factor when the scale
    factor is given). Shape (out_size, in_size); rows sum to 1."""
    out_size = int(math.floor(in_size * scale))
    M = np.zeros((out_size, in_size), dtype=np.float32)
    if out_size == in_size:
        np.fill_diagonal(M, 1.0)
        return M
    inv_scale = 1.0 / scale
    dst = np.arange(out_size, dtype=np.float64)
    real = np.maximum(inv_scale * (dst + 0.5) - 0.5, 0.0)
    idx0 = np.minimum(np.floor(real).astype(np.int64), in_size - 1)
    idx1 = np.where(idx0 < in_size - 1, idx0 + 1, idx0)
    lam1 = (real - idx0).astype(np.float32)
    lam0 = (1.0 - lam1).astype(np.float32)
    rows = np.arange(out_size)
    np.add.at(M, (rows, idx0), lam0)
    np.add.at(M, (rows, idx1), lam1)
    return M


@functools.lru_cache(maxsize=None)
def _spatial_interp_t(h: int, w: int, sh: float, sw: float) -> np.ndarray:
    """kron(MH, MW)^T, shape (H*W, Ho*Wo), float32 (cached per shape/scale)."""
    mh = _interp_matrix_1d(h, sh)
    mw = _interp_matrix_1d(w, sw)
    return np.ascontiguousarray(np.kron(mh, mw).T.astype(np.float32))


def _vmem_capacity_bytes() -> int:
    try:
        return int(pltpu.get_tpu_info().vmem_capacity_bytes)
    except Exception:
        return 64 * 1024 * 1024  # conservative (v7x-sized) fallback


def _dsv_kernel(x_ref, k1_ref, b_ref, mhw_ref, out_ref, *, n_batch: int):
    # x_ref:   (N, C_in*D, H*W)     input voxels, grid-invariant (DMA'd once)
    # k1_ref:  (C_out*Do, C_in*D)   kron(Wconv, MD): fused 1x1x1 conv + D-interp
    # b_ref:   (C_out*Do, 1)        conv bias (repeated over Do)
    # mhw_ref: (H*W, T)  bf16       column chunk of kron(MH, MW)^T  (H/W interp)
    # out_ref: (N*C_out*Do, T)
    zs = []
    for n in range(n_batch):  # N is small; unrolled at trace time
        z = jnp.dot(k1_ref[...], x_ref[n].astype(jnp.float32),
                    preferred_element_type=jnp.float32) + b_ref[...]
        zs.append(z)
    z = zs[0] if n_batch == 1 else jnp.concatenate(zs, axis=0)  # (N*C_out*Do, H*W)
    out_ref[...] = jnp.dot(z.astype(mhw_ref.dtype), mhw_ref[...],
                           preferred_element_type=jnp.float32).astype(out_ref.dtype)


def unet_dsv3_forward(x, weight, bias, scale_factor):
    """x: (N, C_in, D, H, W); weight: (C_out, C_in, 1, 1, 1); bias: (C_out,)."""
    N, C_in, D, H, W = x.shape
    C_out = weight.shape[0]
    if isinstance(scale_factor, (tuple, list)):
        sd, sh, sw = (float(s) for s in scale_factor)
    else:
        sd = sh = sw = float(scale_factor)

    MD = _interp_matrix_1d(D, sd)                       # (Do, D)
    Do = MD.shape[0]
    Ho = _interp_matrix_1d(H, sh).shape[0]
    Wo = _interp_matrix_1d(W, sw).shape[0]
    mhw_np = _spatial_interp_t(H, W, sh, sw)            # (HW, HoWo) f32
    HW, HoWo = mhw_np.shape
    CoutDo = C_out * Do
    rows = N * CoutDo
    CinD = C_in * D

    # ---- VMEM budget -> HoWo chunk T --------------------------------------
    vmem_cap = _vmem_capacity_bytes()
    vmem_limit = min(int(vmem_cap * 3 // 4), 100 * (1 << 20))

    x_bytes = N * CinD * HW * x.dtype.itemsize
    k1_bytes = CoutDo * CinD * 4
    b_bytes = CoutDo * 128 * 4                           # lane-padded bias block
    z_bytes = rows * HW * 6                              # f32 z + bf16 copy
    fixed = 2 * (x_bytes + k1_bytes + b_bytes) + z_bytes + (2 << 20)
    chunk_budget = max(vmem_limit - fixed, 2 << 20)

    per_col = 2 * (HW * 2 + rows * 4)                    # dbl-buffered bf16 mhw + f32 out
    t_max = max(128, (chunk_budget // per_col) // 128 * 128)
    howo_128 = _round_up(HoWo, 128)
    T = min(t_max, howo_128)
    if T >= howo_128 and howo_128 >= 256:
        # prefer >=2 chunks so the "parallel" axis shards across v7x's two TCs
        T = max(128, (howo_128 // 2) // 128 * 128)
    HoWo_pad = _round_up(HoWo, T)
    J = HoWo_pad // T

    # ---- operands ----------------------------------------------------------
    wc = weight.reshape(C_out, C_in).astype(jnp.float32)
    k1 = jnp.kron(wc, jnp.asarray(MD))                   # (C_out*Do, C_in*D)
    b_k = jnp.repeat(bias.astype(jnp.float32), Do).reshape(CoutDo, 1)
    if HoWo_pad != HoWo:
        mhw_np = np.pad(mhw_np, ((0, 0), (0, HoWo_pad - HoWo)))
    mhw_t = jnp.asarray(mhw_np, dtype=jnp.bfloat16)      # (HW, HoWo_pad) bf16

    # Row-major NCDHW -> (N, C_in*D, H*W): pure reshape, native dtype (no upcast).
    x_k = x.reshape(N, CinD, HW)

    cost = pl.CostEstimate(
        flops=2 * rows * CinD * HW * J + 2 * rows * HW * HoWo_pad,
        transcendentals=0,
        bytes_accessed=(x_bytes + k1_bytes + CoutDo * 4
                        + HW * HoWo_pad * 2 + rows * HoWo_pad * 4),
    )

    kernel = functools.partial(_dsv_kernel, n_batch=N)

    out_flat = pl.pallas_call(
        kernel,
        out_shape=jax.ShapeDtypeStruct((rows, HoWo_pad), jnp.float32),
        grid_spec=pltpu.PrefetchScalarGridSpec(
            num_scalar_prefetch=0,
            grid=(J,),
            in_specs=[
                pl.BlockSpec((N, CinD, HW), lambda j: (0, 0, 0)),
                pl.BlockSpec((CoutDo, CinD), lambda j: (0, 0)),
                pl.BlockSpec((CoutDo, 1), lambda j: (0, 0)),
                pl.BlockSpec((HW, T), lambda j: (0, j)),
            ],
            out_specs=pl.BlockSpec((rows, T), lambda j: (0, j)),
        ),
        compiler_params=pltpu.CompilerParams(
            dimension_semantics=("parallel",),
            vmem_limit_bytes=vmem_limit),
        cost_estimate=cost,
    )(x_k, k1, b_k, mhw_t)

    if HoWo_pad != HoWo:
        out_flat = out_flat[:, :HoWo]
    # Lane-dense kernel output (N*C_out*Do, HoWo) -> NCDHW: pure reshape.
    return out_flat.reshape(N, C_out, Do, Ho, Wo)


if __name__ == "__main__":
    # Small, UnetDsv3-consistent shapes: in_size=4, out_size=2, scale_factor=2.
    N, C_in, C_out = 2, 4, 2
    D = H = W = 8
    scale = 2

    key = jax.random.PRNGKey(0)
    kx, kw, kb = jax.random.split(key, 3)
    x = jax.random.normal(kx, (N, C_in, D, H, W), dtype=jnp.float32)
    bound = 1.0 / math.sqrt(C_in)  # PyTorch Conv3d default init range (fan_in = C_in)
    weight = jax.random.uniform(kw, (C_out, C_in, 1, 1, 1), jnp.float32, -bound, bound)
    bias = jax.random.uniform(kb, (C_out,), jnp.float32, -bound, bound)

    out = unet_dsv3_forward(x, weight, bias, scale)
    out = jax.block_until_ready(out)

    # Pure-JAX f32 reference: conv(+bias) then separable trilinear interp.
    MD = jnp.asarray(_interp_matrix_1d(D, float(scale)))
    MH = jnp.asarray(_interp_matrix_1d(H, float(scale)))
    MW = jnp.asarray(_interp_matrix_1d(W, float(scale)))
    y_ref = jnp.einsum('oi,nidhw->nodhw', weight.reshape(C_out, C_in), x) \
        + bias[None, :, None, None, None]
    ref = jnp.einsum('nodhw,Dd,Hh,Ww->noDHW', y_ref, MD, MH, MW)

    assert out.shape == (N, C_out, D * scale, H * scale, W * scale), out.shape
    # bf16 spatial-interp operands (f32 accumulation) -> relaxed tolerance.
    np.testing.assert_allclose(np.asarray(out), np.asarray(ref), rtol=2e-2, atol=2e-2)
    print("KERNEL_OK")
</pallas_src>

<mosaic_0001>
module attributes {stable_mosaic.version = 11 : i64} {
  func.func @_dsv_kernel(%arg0: i32, %arg1: memref<2x32x64xf32, #tpu.memory_space<vmem>>, %arg2: memref<32x32xf32, #tpu.memory_space<vmem>>, %arg3: memref<32x1xf32, #tpu.memory_space<vmem>>, %arg4: memref<64x128xbf16, #tpu.memory_space<vmem>>, %arg5: memref<64x128xf32, #tpu.memory_space<vmem>>) attributes {dimension_semantics = [#tpu.dimension_semantics<parallel>], iteration_bounds = array<i64: 2>, scalar_prefetch = 0 : i64, scratch_operands = 0 : i64, tpu.core_type = #tpu.core_type<tc>, window_params = [{pipeline_mode = #tpu.pipeline_mode<synchronous>, transform_indices = @transform_0, window_bounds = array<i64: 2, 32, 64>}, {pipeline_mode = #tpu.pipeline_mode<synchronous>, transform_indices = @transform_1, window_bounds = array<i64: 32, 32>}, {pipeline_mode = #tpu.pipeline_mode<synchronous>, transform_indices = @transform_2, window_bounds = array<i64: 32, 1>}, {transform_indices = @transform_3, window_bounds = array<i64: 64, 128>}, {transform_indices = @transform_4, window_bounds = array<i64: 64, 128>}]} {
    %c0 = arith.constant 0 : index
    %c0_0 = arith.constant 0 : index
    %0 = vector.load %arg2[%c0, %c0_0] : memref<32x32xf32, #tpu.memory_space<vmem>>, vector<32x32xf32>
    %c0_1 = arith.constant 0 : index
    %c0_2 = arith.constant 0 : index
    %c0_3 = arith.constant 0 : index
    %1 = vector.load %arg1[%c0_1, %c0_2, %c0_3] : memref<2x32x64xf32, #tpu.memory_space<vmem>>, vector<1x32x64xf32>
    %2 = vector.shape_cast %1 : vector<1x32x64xf32> to vector<32x64xf32>
    %cst = arith.constant dense<0.000000e+00> : vector<32x64xf32>
    %3 = tpu.matmul %0, %2, %cst {dimension_numbers = #tpu.dot_dimension_numbers<[1], [0], [0], [1], [0, 0, 1, 1], [], []>} : vector<32x32xf32>, vector<32x64xf32>, vector<32x64xf32> -> vector<32x64xf32>
    %c0_4 = arith.constant 0 : index
    %c0_5 = arith.constant 0 : index
    %4 = vector.load %arg3[%c0_4, %c0_5] : memref<32x1xf32, #tpu.memory_space<vmem>>, vector<32x1xf32>
    %5 = vector.broadcast %4 : vector<32x1xf32> to vector<32x64xf32>
    %6 = arith.addf %3, %5 : vector<32x64xf32>
    %c0_6 = arith.constant 0 : index
    %c0_7 = arith.constant 0 : index
    %7 = vector.load %arg2[%c0_6, %c0_7] : memref<32x32xf32, #tpu.memory_space<vmem>>, vector<32x32xf32>
    %c1 = arith.constant 1 : index
    %c0_8 = arith.constant 0 : index
    %c0_9 = arith.constant 0 : index
    %8 = vector.load %arg1[%c1, %c0_8, %c0_9] : memref<2x32x64xf32, #tpu.memory_space<vmem>>, vector<1x32x64xf32>
    %9 = vector.shape_cast %8 : vector<1x32x64xf32> to vector<32x64xf32>
    %cst_10 = arith.constant dense<0.000000e+00> : vector<32x64xf32>
    %10 = tpu.matmul %7, %9, %cst_10 {dimension_numbers = #tpu.dot_dimension_numbers<[1], [0], [0], [1], [0, 0, 1, 1], [], []>} : vector<32x32xf32>, vector<32x64xf32>, vector<32x64xf32> -> vector<32x64xf32>
    %c0_11 = arith.constant 0 : index
    %c0_12 = arith.constant 0 : index
    %11 = vector.load %arg3[%c0_11, %c0_12] : memref<32x1xf32, #tpu.memory_space<vmem>>, vector<32x1xf32>
    %12 = vector.broadcast %11 : vector<32x1xf32> to vector<32x64xf32>
    %13 = arith.addf %10, %12 : vector<32x64xf32>
    %14 = tpu.concatenate %6, %13 in 0 : vector<32x64xf32>, vector<32x64xf32> -> vector<64x64xf32>
    %15 = arith.truncf %14 : vector<64x64xf32> to vector<64x64xbf16>
    %c0_13 = arith.constant 0 : index
    %c0_14 = arith.constant 0 : index
    %16 = vector.load %arg4[%c0_13, %c0_14] : memref<64x128xbf16, #tpu.memory_space<vmem>>, vector<64x128xbf16>
    %cst_15 = arith.constant dense<0.000000e+00> : vector<64x128xf32>
    %17 = tpu.matmul %15, %16, %cst_15 {dimension_numbers = #tpu.dot_dimension_numbers<[1], [0], [0], [1], [0, 0, 1, 1], [], []>} : vector<64x64xbf16>, vector<64x128xbf16>, vector<64x128xf32> -> vector<64x128xf32>
    %c0_16 = arith.constant 0 : index
    %c0_17 = arith.constant 0 : index
    %18 = vector.load %arg5[%c0_16, %c0_17] : memref<64x128xf32, #tpu.memory_space<vmem>>, vector<64x128xf32>
    tpu.vector_store %arg5[%c0_16, %c0_17], %17 {strides = array<i32>} : memref<64x128xf32, #tpu.memory_space<vmem>>, vector<64x128xf32>,
    return
  }
  func.func @transform_0(%arg0: i32) -> (i32, i32, i32) {
    %c0_i32 = arith.constant 0 : i32
    %c0_i32_0 = arith.constant 0 : i32
    %c0_i32_1 = arith.constant 0 : i32
    %c0_i32_2 = arith.constant 0 : i32
    return %c0_i32, %c0_i32_0, %c0_i32_1 : i32, i32, i32
  }
  func.func @transform_1(%arg0: i32) -> (i32, i32) {
    %c0_i32 = arith.constant 0 : i32
    %c0_i32_0 = arith.constant 0 : i32
    %c0_i32_1 = arith.constant 0 : i32
    return %c0_i32, %c0_i32_0 : i32, i32
  }
  func.func @transform_2(%arg0: i32) -> (i32, i32) {
    %c0_i32 = arith.constant 0 : i32
    %c0_i32_0 = arith.constant 0 : i32
    %c0_i32_1 = arith.constant 0 : i32
    return %c0_i32, %c0_i32_0 : i32, i32
  }
  func.func @transform_3(%arg0: i32) -> (i32, i32) {
    %c0_i32 = arith.constant 0 : i32
    %c0_i32_0 = arith.constant 0 : i32
    return %c0_i32, %arg0 : i32, i32
  }
  func.func @transform_4(%arg0: i32) -> (i32, i32) {
    %c0_i32 = arith.constant 0 : i32
    %c0_i32_0 = arith.constant 0 : i32
    return %c0_i32, %arg0 : i32, i32
  }
}

</mosaic_0001>

<llo_original>
// kernel: tpu_custom_call.1
$region0: #{tpu_custom_call.1}
  #allocation0 [shape = 'u32[]', space=smem, size = 0x4, offset = 0x4, fixed_abs, tag = 'smem constant byte address 0x4 - core index']
  #allocation1 [shape = 'u32[144,128]{1,0:T(1,128)}', space=vmem, size = 0x12000, scoped, tag = 'internal scratch']
  %s0 = inlined_call_operand.hbm [shape: f32[2,32,64], index: 0, kind: input, shape index: {}]
  %s1 = inlined_call_operand.vmem [shape: f32[32,32], index: 1, kind: input, shape index: {}]
  %s2 = inlined_call_operand.vmem [shape: f32[32,1], index: 2, kind: input, shape index: {}]
  %s3 = inlined_call_operand.hbm [shape: bf16[64,256], index: 3, kind: input, shape index: {}]
  %s4 = inlined_call_operand.hbm [shape: f32[64,256], index: 4, kind: output, shape index: {}]
  %s5 = sld [smem:[#allocation0]]
  $region57: #{tpu_custom_call.1} parent=0
    _
  %s7 = ssub.s32 1, %s5
  %s8 = scalar_select 0, %s7, %s5
  $region1: #{tpu_custom_call.1} parent=0
    #allocation2 [shape = 'u8[32768]{0}', space=vmem, size = 0x8000, scoped, tag = 'input window, operand 0, single buffered']
    #allocation3 [shape = 's32[2]{0}', space=sflag, size = 0x8, scoped, tag = 'scoped memory for tpu_custom_call.1']
    #allocation4 [shape = 's32[2]{0}', space=sflag, size = 0x8, scoped, tag = 'scoped memory for tpu_custom_call.1']
    #allocation5 [shape = 'u8[32768]{0}', space=vmem, size = 0x8000, scoped, tag = 'input window, operand 3']
    #allocation6 [shape = 's32[2]{0}', space=sflag, size = 0x8, scoped, tag = 'scoped memory for tpu_custom_call.1']
    #allocation7 [shape = 'u8[65536]{0}', space=vmem, size = 0x10000, scoped, tag = 'output window, operand 0']
    %9 = vsyncpa [#allocation3], 0
    %10 = vsyncpa [#allocation6], 0
    %s11 = scalar_lea.sflag [#allocation6], 1
    %12 = vsyncpa %s11, 0
    %13 = vsyncpa [#allocation4], 0
    %s14 = scalar_lea.sflag [#allocation4], 1
    %15 = vsyncpa %s14, 0
    loop: start=0, step=1, limit=4
    $region2: #{tpu_custom_call.1} parent=1 // loop_pre_header
      _
    $region3: #{tpu_custom_call.1} parent=1 // loop_header
      %s17 = sphi 0, %s21
      %p18 = scmp.ge.s32.totalorder %s17, 4
      %s25 = sphi 0, %s25
      %s27 = sphi 0, %s25
      %s28 = sphi 0, %s27
      %s42 = sphi 0, %s28
      %s46 = sphi 0, %s46
      %s48 = sphi 0, %s46
      %s49 = sphi 0, %s48
      %s63 = sphi 0, %s49
      %s67 = sphi 0, %s67
      %s69 = sphi 0, %s67
      %s70 = sphi 0, %s69
      %s84 = sphi 0, %s70
      %s90 = sphi 0, %s92
      %s93 = sphi 0, %s90
      %s94 = sphi 0, %s93
      %s110 = sphi 0, %s94
      %s116 = sphi 0, %s118
      %s119 = sphi 0, %s116
      %s120 = sphi 0, %s119
      %s136 = sphi 0, %s120
    $region4: #{tpu_custom_call.1} parent=1 // loop_header_branch
      %20 = sbr.rel (%p18) target = $region8
    $region5: #{tpu_custom_call.1} parent=1 // loop_body
      %s22 = ssub.s32 %s17, 1
      %s23 = ssub.s32 %s17, 2
      %s24 = sadd.s32 %s17, 1
      %s26 = sadd.s32 %s25, 1
      %p29 = scmp.eq.s32.totalorder %s17, 1
      %p30 = scmp.ne.s32.totalorder %s25, %s27
      %p31 = scmp.eq.s32.totalorder %s17, 0
      %p32 = por %p30, %p31
      %p33 = scmp.ne.s32.totalorder %s25, %s27
      %p34 = scmp.eq.s32.totalorder %s22, 1
      %p35 = por %p33, %p34
      %p36 = scmp.ne.s32.totalorder %s27, %s28
      %p37 = scmp.eq.s32.totalorder %s22, 0
      %p38 = por %p36, %p37
      %p39 = scmp.ne.s32.totalorder %s27, %s28
      %p40 = scmp.eq.s32.totalorder %s23, 1
      %p41 = por %p39, %p40
      %p43 = scmp.ne.s32.totalorder %s28, %s42
      %p44 = scmp.eq.s32.totalorder %s23, 0
      %p45 = por %p43, %p44
      %s47 = sadd.s32 %s46, 1
      %p50 = scmp.eq.s32.totalorder %s17, 1
      %p51 = scmp.ne.s32.totalorder %s46, %s48
      %p52 = scmp.eq.s32.totalorder %s17, 0
      %p53 = por %p51, %p52
      %p54 = scmp.ne.s32.totalorder %s46, %s48
      %p55 = scmp.eq.s32.totalorder %s22, 1
      %p56 = por %p54, %p55
      %p57 = scmp.ne.s32.totalorder %s48, %s49
      %p58 = scmp.eq.s32.totalorder %s22, 0
      %p59 = por %p57, %p58
      %p60 = scmp.ne.s32.totalorder %s48, %s49
      %p61 = scmp.eq.s32.totalorder %s23, 1
      %p62 = por %p60, %p61
      %p64 = scmp.ne.s32.totalorder %s49, %s63
      %p65 = scmp.eq.s32.totalorder %s23, 0
      %p66 = por %p64, %p65
      %s68 = sadd.s32 %s67, 1
      %p71 = scmp.eq.s32.totalorder %s17, 1
      %p72 = scmp.ne.s32.totalorder %s67, %s69
      %p73 = scmp.eq.s32.totalorder %s17, 0
      %p74 = por %p72, %p73
      %p75 = scmp.ne.s32.totalorder %s67, %s69
      %p76 = scmp.eq.s32.totalorder %s22, 1
      %p77 = por %p75, %p76
      %p78 = scmp.ne.s32.totalorder %s69, %s70
      %p79 = scmp.eq.s32.totalorder %s22, 0
      %p80 = por %p78, %p79
      %p81 = scmp.ne.s32.totalorder %s69, %s70
      %p82 = scmp.eq.s32.totalorder %s23, 1
      %p83 = por %p81, %p82
      %p85 = scmp.ne.s32.totalorder %s70, %s84
      %p86 = scmp.eq.s32.totalorder %s23, 0
      %p87 = por %p85, %p86
      %s88 = ssub.s32 %s17, %s24
      %p89 = scmp.eq.s32.totalorder %s88, 0
      %s91 = sadd.s32 %s90, 1
      %s92 = scalar_select %p89, %s90, %s91
      %p95 = pneg %p89
      %p96 = scmp.eq.s32.totalorder %s17, 1
      %p97 = por %p95, %p96
      %p98 = scmp.ne.s32.totalorder %s90, %s93
      %p99 = scmp.eq.s32.totalorder %s17, 0
      %p100 = por %p98, %p99
      %p101 = scmp.ne.s32.totalorder %s90, %s93
      %p102 = scmp.eq.s32.totalorder %s22, 1
      %p103 = por %p101, %p102
      %p104 = scmp.ne.s32.totalorder %s93, %s94
      %p105 = scmp.eq.s32.totalorder %s22, 0
      %p106 = por %p104, %p105
      %p107 = scmp.ne.s32.totalorder %s93, %s94
      %p108 = scmp.eq.s32.totalorder %s23, 1
      %p109 = por %p107, %p108
      %p111 = scmp.ne.s32.totalorder %s94, %s110
      %p112 = scmp.eq.s32.totalorder %s23, 0
      %p113 = por %p111, %p112
      %s114 = ssub.s32 %s17, %s24
      %p115 = scmp.eq.s32.totalorder %s114, 0
      %s117 = sadd.s32 %s116, 1
      %s118 = scalar_select %p115, %s116, %s117
      %p121 = pneg %p115
      %p122 = scmp.eq.s32.totalorder %s17, 1
      %p123 = por %p121, %p122
      %p124 = scmp.ne.s32.totalorder %s116, %s119
      %p125 = scmp.eq.s32.totalorder %s17, 0
      %p126 = por %p124, %p125
      %p127 = scmp.ne.s32.totalorder %s116, %s119
      %p128 = scmp.eq.s32.totalorder %s22, 1
      %p129 = por %p127, %p128
      %p130 = scmp.ne.s32.totalorder %s119, %s120
      %p131 = scmp.eq.s32.totalorder %s22, 0
      %p132 = por %p130, %p131
      %p133 = scmp.ne.s32.totalorder %s119, %s120
      %p134 = scmp.eq.s32.totalorder %s23, 1
      %p135 = por %p133, %p134
      %p137 = scmp.ne.s32.totalorder %s120, %s136
      %p138 = scmp.eq.s32.totalorder %s23, 0
      %p139 = por %p137, %p138
      %p140 = scmp.le.s32.totalorder 1, %s17
      %p141 = scmp.lt.s32.totalorder %s17, 3
      %p142 = pnand %p140, %p141
      %p143 = pneg %p142
      // Predicated region
      $region9: #{tpu_custom_call.1} parent=5 // pred_check
        _
      $region10: #{tpu_custom_call.1} parent=5 // pred_check_branch
        %145 = sbr.rel (%p142) target = $region12
      $region11: #{tpu_custom_call.1} parent=5 // pred_region
        %s146 = ssub.s32 %s17, 1
        // Predicated region
        $region13: #{tpu_custom_call.1} parent=11 // pred_check
          %p147 = pneg %p38
        $region14: #{tpu_custom_call.1} parent=11 // pred_check_branch
          %149 = sbr.rel (%p147) target = $region16
        $region15: #{tpu_custom_call.1} parent=11 // pred_region
          %s151 = ssub.s32 1024, 1024
          %152 = vsyncadd [#allocation3], %s151
          %s153 = sshll.u32 [#allocation2], 4
          %s154 = int_to_ptr.vmem [resolvable:$true] %s153
          %159 = dma.hbm_to_vmem [thread:$0]  %s0, 1024, %s154, [#allocation3], 128, 128, 8
        $region16: #{tpu_custom_call.1} parent=11 // pred_fallthru
          _
        // Predicated region
        $region17: #{tpu_custom_call.1} parent=11 // pred_check
          %p160 = pneg %p59
        $region18: #{tpu_custom_call.1} parent=11 // pred_check_branch
          %162 = sbr.rel (%p160) target = $region20
        $region19: #{tpu_custom_call.1} parent=11 // pred_region
          _
        $region20: #{tpu_custom_call.1} parent=11 // pred_fallthru
          _
        // Predicated region
        $region21: #{tpu_custom_call.1} parent=11 // pred_check
          %p163 = pneg %p80
        $region22: #{tpu_custom_call.1} parent=11 // pred_check_branch
          %165 = sbr.rel (%p163) target = $region24
        $region23: #{tpu_custom_call.1} parent=11 // pred_region
          _
        $region24: #{tpu_custom_call.1} parent=11 // pred_fallthru
          _
      $region12: #{tpu_custom_call.1} parent=5 // pred_fallthru
        _
      %p166 = scmp.lt.s32.totalorder %s17, 2
      // Predicated region
      $region25: #{tpu_custom_call.1} parent=5 // pred_check
        %p167 = pneg %p166
      $region26: #{tpu_custom_call.1} parent=5 // pred_check_branch
        %169 = sbr.rel (%p167) target = $region28
      $region27: #{tpu_custom_call.1} parent=5 // pred_region
        // Predicated region
        $region29: #{tpu_custom_call.1} parent=27 // pred_check
          %p170 = pneg %p100
        $region30: #{tpu_custom_call.1} parent=27 // pred_check_branch
          %172 = sbr.rel (%p170) target = $region32
        $region31: #{tpu_custom_call.1} parent=27 // pred_region
          %s173 = sand.u32 %s90, 1
          %s174 = scalar_lea.sflag [#allocation6], %s173
          %s175 = sand.u32 %s90, 1
          %s176 = smul.addr %s175, 32
          %s177 = scalar_lea.vmem [#allocation5], %s176
          %s179 = ssub.s32 512, 512
          %180 = vsyncadd %s174, %s179
          %s181 = smul.addr %s17, 64
          %s182 = scalar_lea.hbm %s3, %s181
          %s183 = sshll.u32 %s177, 4
          %s184 = int_to_ptr.vmem [resolvable:$true] %s183
          %189 = dma.hbm_to_vmem [thread:$0]  %s182, 512, %s184, %s174, 128, 64, 4
        $region32: #{tpu_custom_call.1} parent=27 // pred_fallthru
          _
      $region28: #{tpu_custom_call.1} parent=5 // pred_fallthru
        _
      %p190 = scmp.le.s32.totalorder 1, %s17
      %p191 = scmp.lt.s32.totalorder %s17, 3
      %p192 = pnand %p190, %p191
      %p193 = pneg %p192
      // Predicated region
      $region33: #{tpu_custom_call.1} parent=5 // pred_check
        _
      $region34: #{tpu_custom_call.1} parent=5 // pred_check_branch
        %195 = sbr.rel (%p192) target = $region36
      $region35: #{tpu_custom_call.1} parent=5 // pred_region
        %s196 = ssub.s32 %s17, 1
        // Predicated region
        $region37: #{tpu_custom_call.1} parent=35 // pred_check
          %p197 = pneg %p38
        $region38: #{tpu_custom_call.1} parent=35 // pred_check_branch
          %199 = sbr.rel (%p197) target = $region40
        $region39: #{tpu_custom_call.1} parent=35 // pred_region
          %200 = dma.done [#allocation3], 1024
        $region40: #{tpu_custom_call.1} parent=35 // pred_fallthru
          _
        %s201 = sand.u32 %s93, 1
        %s202 = scalar_lea.sflag [#allocation6], %s201
        %s203 = sand.u32 %s93, 1
        %s204 = smul.addr %s203, 32
        %s205 = scalar_lea.vmem [#allocation5], %s204
        // Predicated region
        $region41: #{tpu_custom_call.1} parent=35 // pred_check
          %p206 = pneg %p106
        $region42: #{tpu_custom_call.1} parent=35 // pred_check_branch
          %208 = sbr.rel (%p206) target = $region44
        $region43: #{tpu_custom_call.1} parent=35 // pred_region
          %209 = dma.done %s202, 512
        $region44: #{tpu_custom_call.1} parent=35 // pred_fallthru
          _
        %p210 = pneg %p38
        %p211 = pneg %p35
        %p212 = pneg %p59
        %p213 = pneg %p56
        %p214 = pneg %p80
        %p215 = pneg %p77
        %s216 = sand.u32 %s93, 1
        %s217 = scalar_lea.sflag [#allocation6], %s216
        %s218 = sand.u32 %s93, 1
        %s219 = smul.addr %s218, 32
        %s220 = scalar_lea.vmem [#allocation5], %s219
        %p221 = pneg %p106
        %p222 = pneg %p103
        %p223 = pneg %p132
        %p224 = pneg %p129
        %s225 = sand.u32 %s119, 1
        %s226 = scalar_lea.sflag [#allocation4], %s225
        %s227 = sand.u32 %s119, 1
        %s228 = smul.addr %s227, 64
        %s229 = scalar_lea.vmem [#allocation7], %s228
        %v231 = vld [vmem:[%s1] sm:$0xff]
        %v232 = vld [vmem:[%s1 + $0x8] sm:$0xff]
        %v233 = vld [vmem:[%s1 + $0x10] sm:$0xff]
        %v234 = vld [vmem:[%s1 + $0x18] sm:$0xff]
        %v235 = vld [vmem:[#allocation2] sm:$0xff]
        %v236 = vld [vmem:[#allocation2 + $0x8] sm:$0xff]
        %v237 = vld [vmem:[#allocation2 + $0x10] sm:$0xff]
        %v238 = vld [vmem:[#allocation2 + $0x18] sm:$0xff]
        %v239 = vld [vmem:[%s2] sm:$0xff]
        %v240 = vld [vmem:[%s2 + $0x8] sm:$0xff]
        %v241 = vld [vmem:[%s2 + $0x10] sm:$0xff]
        %v242 = vld [vmem:[%s2 + $0x18] sm:$0xff]
        %244 = vset.pattern.permute.xlu0 0
        %245 = vperm.xlu0 %244, %v239
        %v246 = vpop.permute.xlu0 %245
        %249 = vset.pattern.permute.xlu0 0
        %250 = vperm.xlu0 %249, %v240
        %v251 = vpop.permute.xlu0 %250
        %254 = vset.pattern.permute.xlu0 0
        %255 = vperm.xlu0 %254, %v241
        %v256 = vpop.permute.xlu0 %255
        %259 = vset.pattern.permute.xlu0 0
        %260 = vperm.xlu0 %259, %v242
        %v261 = vpop.permute.xlu0 %260
        %vm263 = vcmask 261120
        %v265 = vsel %vm263, %v231, 0
        %v268 = vsel %vm263, %v232, 0
        %v271 = vsel %vm263, %v233, 0
        %v274 = vsel %vm263, %v234, 0
        %276 = vmatprep.subr.mxu0 0.0
        %277 = vmatpush1.msra.mxu0 %v235
        %278 = vmatprep.subr.mxu0 0.0
        %279 = vmatpush1.msra.mxu0 %v236
        %280 = vmatprep.subr.mxu0 0.0
        %281 = vmatpush1.msra.mxu0 %v237
        %282 = vmatprep.subr.mxu0 0.0
        %283 = vmatpush1.msra.mxu0 %v238
        %284 = vmatprep.subr.mxu0 0.0
        %285 = vmatpush1.msra.mxu0 0.0
        %286 = vmatprep.subr.mxu0 0.0
        %287 = vmatpush1.msra.mxu0 0.0
        %288 = vmatprep.subr.mxu0 0.0
        %289 = vmatpush1.msra.mxu0 0.0
        %290 = vmatprep.subr.mxu0 0.0
        %291 = vmatpush1.msra.mxu0 0.0
        %292 = vmatprep.subr.mxu0 0.0
        %293 = vmatpush1.msra.mxu0 0.0
        %294 = vmatprep.subr.mxu0 0.0
        %295 = vmatpush1.msra.mxu0 0.0
        %296 = vmatprep.subr.mxu0 0.0
        %297 = vmatpush1.msra.mxu0 0.0
        %298 = vmatprep.subr.mxu0 0.0
        %299 = vmatpush1.msra.mxu0 0.0
        %300 = vmatprep.subr.mxu0 0.0
        %301 = vmatpush1.msra.mxu0 0.0
        %302 = vmatprep.subr.mxu0 0.0
        %303 = vmatpush1.msra.mxu0 0.0
        %304 = vmatprep.subr.mxu0 0.0
        %305 = vmatpush1.msra.mxu0 0.0
        %306 = vmatprep.subr.mxu0 0.0
        %307 = vmatpush1.msra.mxu0 0.0
        %308 = vmatprep.subr.mxu0 0.0
        %309 = vmatpush1.msra.mxu0 0.0
        %310 = vmatprep.subr.mxu0 0.0
        %311 = vmatpush1.msra.mxu0 0.0
        %312 = vmatprep.subr.mxu0 0.0
        %313 = vmatpush1.msra.mxu0 0.0
        %314 = vmatprep.subr.mxu0 0.0
        %315 = vmatpush1.msra.mxu0 0.0
        %316 = vmatprep.subr.mxu0 0.0
        %317 = vmatpush1.msra.mxu0 0.0
        %318 = vmatprep.subr.mxu0 0.0
        %319 = vmatpush1.msra.mxu0 0.0
        %320 = vmatprep.subr.mxu0 0.0
        %321 = vmatpush1.msra.mxu0 0.0
        %322 = vmatprep.subr.mxu0 0.0
        %323 = vmatpush1.msra.mxu0 0.0
        %324 = vmatprep.subr.mxu0 0.0
        %325 = vmatpush1.msra.mxu0 0.0
        %326 = vmatprep.subr.mxu0 0.0
        %327 = vmatpush1.msra.mxu0 0.0
        %328 = vmatprep.subr.mxu0 0.0
        %329 = vmatpush1.msra.mxu0 0.0
        %330 = vmatprep.subr.mxu0 0.0
        %331 = vmatpush1.msra.mxu0 0.0
        %332 = vmatprep.subr.mxu0 0.0
        %333 = vmatpush1.msra.mxu0 0.0
        %334 = vmatprep.subr.mxu0 0.0
        %335 = vmatpush1.msra.mxu0 0.0
        %336 = vmatprep.subr.mxu0 0.0
        %337 = vmatpush1.msra.mxu0 0.0
        %338 = vmatprep.subr.mxu0 0.0
        %339 = vmatpush1.msra.mxu0 0.0
        %340 = vmatprep.mubr.f32.mxu0 0.0
        %341 = vmatmul.mubr.f32.gmra.mrb[0].mxu0 %v265
        %v342 = vpop.f32.mrb[0].mxu0
        %v343 = vadd.f32 %v246, %v342
        %v344 = vpop.f32.mrb[0].mxu0
        %345 = vmatprep.mubr.f32.mxu0 0.0
        %346 = vmatmul.mubr.f32.gmra.mrb[0].mxu0 %v268
        %v347 = vpop.f32.mrb[0].mxu0
        %v348 = vadd.f32 %v251, %v347
        %v349 = vpop.f32.mrb[0].mxu0
        %350 = vmatprep.mubr.f32.mxu0 0.0
        %351 = vmatmul.mubr.f32.gmra.mrb[0].mxu0 %v271
        %v352 = vpop.f32.mrb[0].mxu0
        %v353 = vadd.f32 %v256, %v352
        %v354 = vpop.f32.mrb[0].mxu0
        %355 = vmatprep.mubr.f32.mxu0 0.0
        %356 = vmatmul.mubr.f32.gmra.mrb[0].mxu0 %v274
        %v357 = vpop.f32.mrb[0].mxu0
        %v358 = vadd.f32 %v261, %v357
        %v359 = vpop.f32.mrb[0].mxu0
        %360 = vdwg.mxu0
        %s361 = scalar_lea.vmem [#allocation2], 32
        %v362 = vld [vmem:[%s361] sm:$0xff]
        %v363 = vld [vmem:[%s361 + $0x8] sm:$0xff]
        %v364 = vld [vmem:[%s361 + $0x10] sm:$0xff]
        %v365 = vld [vmem:[%s361 + $0x18] sm:$0xff]
        %366 = vmatprep.subr.mxu0 0.0
        %367 = vmatpush1.msra.mxu0 %v362
        %368 = vmatprep.subr.mxu0 0.0
        %369 = vmatpush1.msra.mxu0 %v363
        %370 = vmatprep.subr.mxu0 0.0
        %371 = vmatpush1.msra.mxu0 %v364
        %372 = vmatprep.subr.mxu0 0.0
        %373 = vmatpush1.msra.mxu0 %v365
        %374 = vmatprep.subr.mxu0 0.0
        %375 = vmatpush1.msra.mxu0 0.0
        %376 = vmatprep.subr.mxu0 0.0
        %377 = vmatpush1.msra.mxu0 0.0
        %378 = vmatprep.subr.mxu0 0.0
        %379 = vmatpush1.msra.mxu0 0.0
        %380 = vmatprep.subr.mxu0 0.0
        %381 = vmatpush1.msra.mxu0 0.0
        %382 = vmatprep.subr.mxu0 0.0
        %383 = vmatpush1.msra.mxu0 0.0
        %384 = vmatprep.subr.mxu0 0.0
        %385 = vmatpush1.msra.mxu0 0.0
        %386 = vmatprep.subr.mxu0 0.0
        %387 = vmatpush1.msra.mxu0 0.0
        %388 = vmatprep.subr.mxu0 0.0
        %389 = vmatpush1.msra.mxu0 0.0
        %390 = vmatprep.subr.mxu0 0.0
        %391 = vmatpush1.msra.mxu0 0.0
        %392 = vmatprep.subr.mxu0 0.0
        %393 = vmatpush1.msra.mxu0 0.0
        %394 = vmatprep.subr.mxu0 0.0
        %395 = vmatpush1.msra.mxu0 0.0
        %396 = vmatprep.subr.mxu0 0.0
        %397 = vmatpush1.msra.mxu0 0.0
        %398 = vmatprep.subr.mxu0 0.0
        %399 = vmatpush1.msra.mxu0 0.0
        %400 = vmatprep.subr.mxu0 0.0
        %401 = vmatpush1.msra.mxu0 0.0
        %402 = vmatprep.subr.mxu0 0.0
        %403 = vmatpush1.msra.mxu0 0.0
        %404 = vmatprep.subr.mxu0 0.0
        %405 = vmatpush1.msra.mxu0 0.0
        %406 = vmatprep.subr.mxu0 0.0
        %407 = vmatpush1.msra.mxu0 0.0
        %408 = vmatprep.subr.mxu0 0.0
        %409 = vmatpush1.msra.mxu0 0.0
        %410 = vmatprep.subr.mxu0 0.0
        %411 = vmatpush1.msra.mxu0 0.0
        %412 = vmatprep.subr.mxu0 0.0
        %413 = vmatpush1.msra.mxu0 0.0
        %414 = vmatprep.subr.mxu0 0.0
        %415 = vmatpush1.msra.mxu0 0.0
        %416 = vmatprep.subr.mxu0 0.0
        %417 = vmatpush1.msra.mxu0 0.0
        %418 = vmatprep.subr.mxu0 0.0
        %419 = vmatpush1.msra.mxu0 0.0
        %420 = vmatprep.subr.mxu0 0.0
        %421 = vmatpush1.msra.mxu0 0.0
        %422 = vmatprep.subr.mxu0 0.0
        %423 = vmatpush1.msra.mxu0 0.0
        %424 = vmatprep.subr.mxu0 0.0
        %425 = vmatpush1.msra.mxu0 0.0
        %426 = vmatprep.subr.mxu0 0.0
        %427 = vmatpush1.msra.mxu0 0.0
        %428 = vmatprep.subr.mxu0 0.0
        %429 = vmatpush1.msra.mxu0 0.0
        %430 = vmatprep.mubr.f32.mxu0 0.0
        %431 = vmatmul.mubr.f32.gmra.mrb[0].mxu0 %v265
        %v432 = vpop.f32.mrb[0].mxu0
        %v433 = vadd.f32 %v246, %v432
        %v434 = vpop.f32.mrb[0].mxu0
        %435 = vmatprep.mubr.f32.mxu0 0.0
        %436 = vmatmul.mubr.f32.gmra.mrb[0].mxu0 %v268
        %v437 = vpop.f32.mrb[0].mxu0
        %v438 = vadd.f32 %v251, %v437
        %v439 = vpop.f32.mrb[0].mxu0
        %440 = vmatprep.mubr.f32.mxu0 0.0
        %441 = vmatmul.mubr.f32.gmra.mrb[0].mxu0 %v271
        %v442 = vpop.f32.mrb[0].mxu0
        %v443 = vadd.f32 %v256, %v442
        %v444 = vpop.f32.mrb[0].mxu0
        %445 = vmatprep.mubr.f32.mxu0 0.0
        %446 = vmatmul.mubr.f32.gmra.mrb[0].mxu0 %v274
        %v447 = vpop.f32.mrb[0].mxu0
        %v448 = vadd.f32 %v261, %v447
        %v449 = vpop.f32.mrb[0].mxu0
        %450 = vdwg.mxu0
        %v451 = vpack.c.bf16 %v348, %v343
        %v452 = vpack.c.bf16 %v358, %v353
        %v453 = vpack.c.bf16 %v438, %v433
        %v454 = vpack.c.bf16 %v448, %v443
        %v455 = vld [vmem:[%s205] sm:$0xf]
        %v456 = vld [vmem:[%s205 + $0x4] sm:$0xf]
        %v457 = vld [vmem:[%s205 + $0x8] sm:$0xf]
        %v458 = vld [vmem:[%s205 + $0xc] sm:$0xf]
        %v459 = vld [vmem:[%s205 + $0x10] sm:$0xf]
        %v460 = vld [vmem:[%s205 + $0x14] sm:$0xf]
        %v461 = vld [vmem:[%s205 + $0x18] sm:$0xf]
        %v462 = vld [vmem:[%s205 + $0x1c] sm:$0xf]
        %v471 = vunpack.c.l.b16 %v455
        %v472 = vunpack.c.l.b16 %v456
        %v473 = vunpack.c.l.b16 %v457
        %v474 = vunpack.c.l.b16 %v458
        %v475 = vunpack.c.l.b16 %v459
        %v476 = vunpack.c.l.b16 %v460
        %v477 = vunpack.c.l.b16 %v461
        %v478 = vunpack.c.l.b16 %v462
        %v479 = vpack.c.b16 %v472, %v471
        %v480 = vpack.c.b16 %v474, %v473
        %v481 = vpack.c.b16 %v476, %v475
        %v482 = vpack.c.b16 %v478, %v477
        %vm487 = vcmask 523264
        %v489 = vsel %vm487, %v451, 0
        %v492 = vsel %vm487, %v452, 0
        %v495 = vsel %vm487, %v453, 0
        %v498 = vsel %vm487, %v454, 0
        %500 = vmatprep.subr.bf16.mxu0 0
        %501 = vmatpush1.bf16.msra.mxu0 %v479
        %502 = vmatprep.subr.bf16.mxu0 0
        %503 = vmatpush1.bf16.msra.mxu0 %v480
        %504 = vmatprep.subr.bf16.mxu0 0
        %505 = vmatpush1.bf16.msra.mxu0 %v481
        %506 = vmatprep.subr.bf16.mxu0 0
        %507 = vmatpush1.bf16.msra.mxu0 %v482
        %508 = vmatprep.subr.bf16.mxu0 0
        %509 = vmatpush1.bf16.msra.mxu0 0
        %510 = vmatprep.subr.bf16.mxu0 0
        %511 = vmatpush1.bf16.msra.mxu0 0
        %512 = vmatprep.subr.bf16.mxu0 0
        %513 = vmatpush1.bf16.msra.mxu0 0
        %514 = vmatprep.subr.bf16.mxu0 0
        %515 = vmatpush1.bf16.msra.mxu0 0
        %516 = vmatprep.subr.bf16.mxu0 0
        %517 = vmatpush1.bf16.msra.mxu0 0
        %518 = vmatprep.subr.bf16.mxu0 0
        %519 = vmatpush1.bf16.msra.mxu0 0
        %520 = vmatprep.subr.bf16.mxu0 0
        %521 = vmatpush1.bf16.msra.mxu0 0
        %522 = vmatprep.subr.bf16.mxu0 0
        %523 = vmatpush1.bf16.msra.mxu0 0
        %524 = vmatprep.subr.bf16.mxu0 0
        %525 = vmatpush1.bf16.msra.mxu0 0
        %526 = vmatprep.subr.bf16.mxu0 0
        %527 = vmatpush1.bf16.msra.mxu0 0
        %528 = vmatprep.subr.bf16.mxu0 0
        %529 = vmatpush1.bf16.msra.mxu0 0
        %530 = vmatprep.subr.bf16.mxu0 0
        %531 = vmatpush1.bf16.msra.mxu0 0
        %532 = vmatprep.mubr.bf16.mxu0 0
        %533 = vmatmul.mubr.bf16.gmra.mrb[0].mxu0 %v489
        %v534 = vpop.f32.mrb[0].mxu0
        %v535 = vadd.f32 0.0, %v534
        %v536 = vpop.f32.mrb[0].mxu0
        %v537 = vpop.f32.mrb[0].mxu0
        %v538 = vadd.f32 0.0, %v537
        %v539 = vpop.f32.mrb[0].mxu0
        %540 = vmatprep.mubr.bf16.mxu0 0
        %541 = vmatmul.mubr.bf16.gmra.mrb[0].mxu0 %v492
        %v542 = vpop.f32.mrb[0].mxu0
        %v543 = vadd.f32 0.0, %v542
        %v544 = vpop.f32.mrb[0].mxu0
        %v545 = vpop.f32.mrb[0].mxu0
        %v546 = vadd.f32 0.0, %v545
        %v547 = vpop.f32.mrb[0].mxu0
        %548 = vmatprep.mubr.bf16.mxu0 0
        %549 = vmatmul.mubr.bf16.gmra.mrb[0].mxu0 %v495
        %v550 = vpop.f32.mrb[0].mxu0
        %v551 = vadd.f32 0.0, %v550
        %v552 = vpop.f32.mrb[0].mxu0
        %v553 = vpop.f32.mrb[0].mxu0
        %v554 = vadd.f32 0.0, %v553
        %v555 = vpop.f32.mrb[0].mxu0
        %556 = vmatprep.mubr.bf16.mxu0 0
        %557 = vmatmul.mubr.bf16.gmra.mrb[0].mxu0 %v498
        %v558 = vpop.f32.mrb[0].mxu0
        %v559 = vadd.f32 0.0, %v558
        %v560 = vpop.f32.mrb[0].mxu0
        %v561 = vpop.f32.mrb[0].mxu0
        %v562 = vadd.f32 0.0, %v561
        %v563 = vpop.f32.mrb[0].mxu0
        %564 = vdwg.mxu0
        %565 = vst [vmem:[%s229] sm:$0xff] %v535
        %566 = vst [vmem:[%s229 + $0x8] sm:$0xff] %v538
        %567 = vst [vmem:[%s229 + $0x10] sm:$0xff] %v543
        %568 = vst [vmem:[%s229 + $0x18] sm:$0xff] %v546
        %569 = vst [vmem:[%s229 + $0x20] sm:$0xff] %v551
        %570 = vst [vmem:[%s229 + $0x28] sm:$0xff] %v554
        %571 = vst [vmem:[%s229 + $0x30] sm:$0xff] %v559
        %572 = vst [vmem:[%s229 + $0x38] sm:$0xff] %v562
        %s573 = sand.u32 %s119, 1
        %s574 = scalar_lea.sflag [#allocation4], %s573
        %s575 = sand.u32 %s119, 1
        %s576 = smul.addr %s575, 64
        %s577 = scalar_lea.vmem [#allocation7], %s576
        // Predicated region
        $region45: #{tpu_custom_call.1} parent=35 // pred_check
          %p578 = pneg %p129
        $region46: #{tpu_custom_call.1} parent=35 // pred_check_branch
          %580 = sbr.rel (%p578) target = $region48
        $region47: #{tpu_custom_call.1} parent=35 // pred_region
          %s582 = ssub.s32 1024, 1024
          %583 = vsyncadd %s574, %s582
          %s584 = smul.addr %s22, 128
          %s585 = scalar_lea.hbm %s4, %s584
          %s586 = sshll.u32 %s577, 4
          %s587 = int_to_ptr.vmem [resolvable:$true] %s586
          %592 = dma.vmem_to_hbm [thread:$0]  %s587, 1024, %s585, %s574, 128, 256, 8
        $region48: #{tpu_custom_call.1} parent=35 // pred_fallthru
          _
      $region36: #{tpu_custom_call.1} parent=5 // pred_fallthru
        _
      %p593 = scmp.le.s32.totalorder 2, %s17
      // Predicated region
      $region49: #{tpu_custom_call.1} parent=5 // pred_check
        %p594 = pneg %p593
      $region50: #{tpu_custom_call.1} parent=5 // pred_check_branch
        %596 = sbr.rel (%p594) target = $region52
      $region51: #{tpu_custom_call.1} parent=5 // pred_region
        %s597 = ssub.s32 %s17, 2
        // Predicated region
        $region53: #{tpu_custom_call.1} parent=51 // pred_check
          %p598 = pneg %p135
        $region54: #{tpu_custom_call.1} parent=51 // pred_check_branch
          %600 = sbr.rel (%p598) target = $region56
        $region55: #{tpu_custom_call.1} parent=51 // pred_region
          %s601 = sand.u32 %s120, 1
          %s602 = scalar_lea.sflag [#allocation4], %s601
          %s603 = sand.u32 %s120, 1
          %s604 = smul.addr %s603, 64
          %s605 = scalar_lea.vmem [#allocation7], %s604
          %606 = dma.done %s602, 1024
        $region56: #{tpu_custom_call.1} parent=51 // pred_fallthru
          _
      $region52: #{tpu_custom_call.1} parent=5 // pred_fallthru
        _
    $region6: #{tpu_custom_call.1} parent=1 // loop_footer
      %s21 = sadd.s32 1, %s17
    $region7: #{tpu_custom_call.1} parent=1 // loop_footer_branch
      %16 = sbr.rel target = $region3
    $region8: #{tpu_custom_call.1} parent=1 // loop_exit
      _
    %607 = vsyncpa [#allocation3], 1
    %s608 = scalar_lea.sflag [#allocation3], 1
    %609 = vsyncpa %s608, 1
    %610 = vsyncpa [#allocation6], 1
    %s611 = scalar_lea.sflag [#allocation6], 1
    %612 = vsyncpa %s611, 1
    %613 = vsyncpa [#allocation4], 1
    %s614 = scalar_lea.sflag [#allocation4], 1
    %615 = vsyncpa %s614, 1

</llo_original>
